<compile_context>
chip_gen: v5e
topology: v5e:2x2
jax: 0.10.0
libtpu: 0.0.40
codegen_flags: <defaults>
</compile_context>

<pallas_src>
import functools

import jax
import jax.numpy as jnp
from jax.experimental import pallas as pl
from jax.experimental.pallas import tpu as pltpu

# ----- config (matches the PyTorch module's __init__) -----
N_EMBED = 32          # config['n_embed']
N_HEADS = 4           # config['att_head_num']
HEAD_SIZE = N_EMBED // N_HEADS
CONTEXT_LEN = 8       # config['context_length'] == T
BATCH = 2
LN_EPS = 1e-5
NEG_INF = -1e30


def transformer_block_kernel(x_ref, wslab_ref, wff2_ref, vec_ref, o_ref, att_ref,
                             *, n_heads, ctx_len):
    x = x_ref[...].astype(jnp.float32)                      # (BT, C)
    BT, C = x.shape
    hs = C // n_heads
    F4 = 4 * C

    vecs = vec_ref[...]                                     # (8, 4C) packed vectors
    g1, b1 = vecs[0:1, :C], vecs[1:2, :C]
    g2, b2 = vecs[2:3, :C], vecs[3:4, :C]
    bproj, bff2 = vecs[4:5, :C], vecs[5:6, :C]
    bff1 = vecs[6:7, :]                                     # (1, 4C)

    def layer_norm(v, g, b):
        # Exact VPU/XLU statistics (biased variance, eps inside rsqrt) — see header note.
        mu = jnp.mean(v, axis=-1, keepdims=True)
        vc = v - mu
        var = jnp.mean(vc * vc, axis=-1, keepdims=True)
        return vc * jax.lax.rsqrt(var + LN_EPS) * g + b

    # ---- LayerNorm 1 ----
    x1 = layer_norm(x, g1, b1)

    # ---- fused QKV projection (wq pre-scaled by C**-0.5 at pack time) ----
    qkv = jnp.dot(x1, wslab_ref[:, 0:F4], preferred_element_type=jnp.float32)  # (BT, 4C)
    q = qkv[:, :C]
    k = qkv[:, C:2 * C]
    v = qkv[:, 2 * C:3 * C]

    # ---- block-diagonal (per batch element) causal additive mask, built in-register ----
    row = jax.lax.broadcasted_iota(jnp.int32, (BT, BT), 0)
    col = jax.lax.broadcasted_iota(jnp.int32, (BT, BT), 1)
    inv_t = 1.0 / ctx_len
    row_b = jnp.floor((row.astype(jnp.float32) + 0.5) * inv_t)   # batch id of the row
    col_b = jnp.floor((col.astype(jnp.float32) + 0.5) * inv_t)   # batch id of the col
    keep = (row >= col) & (row_b == col_b)
    amask = jnp.where(keep, 0.0, NEG_INF)                   # 0 keep / -1e30 drop
    # NOTE: every row keeps at least its diagonal entry, so no all-masked rows / NaNs.

    # ---- multi-head causal attention; head outputs land in a VMEM scratch ----
    ones_tt = jnp.ones((BT, BT), jnp.float32)               # MXU row-sum helper (hoisted)
    qkT = (((1,), (1,)), ((), ()))                          # contract last dims: q_h @ k_h^T
    for h in range(n_heads):                                # static unroll; n_heads is tiny
        sl = slice(h * hs, (h + 1) * hs)
        s = jax.lax.dot_general(q[:, sl], k[:, sl], qkT,
                                preferred_element_type=jnp.float32) + amask
        s = s - jnp.max(s, axis=-1, keepdims=True)
        p = jnp.exp(s)
        # Row-sum on the otherwise-idle MXU; reciprocal on the EUP + one Newton step
        # (keeps the divide off the VPU critical path while staying ~exact).
        d = jnp.dot(p, ones_tt, preferred_element_type=jnp.float32)
        inv = pl.reciprocal(d, approx=True)
        inv = inv * (2.0 - d * inv)
        # head_dropout / heads_dropout: identity at inference
        att_ref[:, sl] = jnp.dot(p * inv, v[:, sl], preferred_element_type=jnp.float32)

    # ---- single output projection over the concatenated heads ----
    wproj = wslab_ref[:, 2 * F4:2 * F4 + C]                 # (C, C), 128-lane-aligned start
    proj = jnp.dot(att_ref[...], wproj, preferred_element_type=jnp.float32)
    x2 = x1 + proj + bproj          # residual around post-LN1 x1, as in the PyTorch module

    # ---- LayerNorm 2 ----
    x3 = layer_norm(x2, g2, b2)

    # ---- feed-forward: Linear(C->4C) -> ReLU -> Linear(4C->C); dropout identity ----
    h1 = jnp.dot(x3, wslab_ref[:, F4:2 * F4], preferred_element_type=jnp.float32) + bff1
    h1 = jnp.maximum(h1, 0.0)
    ff = jnp.dot(h1, wff2_ref[...], preferred_element_type=jnp.float32) + bff2

    o_ref[...] = (x3 + ff).astype(o_ref.dtype)


def prep_params(params):
    """ONE-TIME packing of PyTorch-style params into the kernel operand layout.

    The hot path then passes exactly four operands:
      x (BT,C), wslab (C, 12C), wff2 (4C, C), vecs (8, 4C).
    wslab column groups (each starting on a 128-lane boundary at C=32):
      [ 0, 4C)  : [wq * C**-0.5 | wk | wv | 0]   fused, pre-scaled QKV
      [4C, 8C)  : wff1
      [8C,12C)  : [wproj | 0]
    vecs rows: g1, b1, g2, b2, bproj, bff2 (C lanes, zero-padded), bff1 (4C), zeros.
    """
    (wq, wk, wv, wproj, bproj, wff1, bff1, wff2, bff2, g1, b1, g2, b2) = params
    C = wq.shape[0]
    F4 = wff1.shape[1]
    dt = wq.dtype
    scale = C ** -0.5
    qkv_grp = jnp.concatenate([wq * scale, wk, wv, jnp.zeros((C, F4 - 3 * C), dt)], axis=1)
    proj_grp = jnp.concatenate([wproj, jnp.zeros((C, F4 - C), dt)], axis=1)
    wslab = jnp.concatenate([qkv_grp, wff1, proj_grp], axis=1)            # (C, 12C)

    def pad(vrow):
        return jnp.concatenate([vrow, jnp.zeros((1, F4 - vrow.shape[1]), dt)], axis=1)

    vecs = jnp.concatenate([pad(g1), pad(b1), pad(g2), pad(b2), pad(bproj), pad(bff2),
                            bff1, jnp.zeros((1, F4), dt)], axis=0)        # (8, 4C)
    return wslab, wff2, vecs


@jax.jit
def transformer_block(x, wslab, wff2, vecs):
    """Hot wrapper: reshape + one pallas_call, nothing else."""
    B, T, C = x.shape
    BT = B * T
    kern = functools.partial(transformer_block_kernel, n_heads=N_HEADS, ctx_len=T)
    out2d = pl.pallas_call(
        kern,
        out_shape=jax.ShapeDtypeStruct((BT, C), x.dtype),
        # No grid: the whole problem (~0.4 MFLOP, ~55 KiB resident) runs as a single
        # invocation -> no per-step pipeline overhead. Scale-up note: add a "parallel"
        # batch/row grid axis (engages the 2nd TC on v7x) and iota-generate the mask
        # per tile before BT grows enough for O(BT^2) scores to pressure VMEM.
        scratch_shapes=[pltpu.VMEM((BT, C), jnp.float32)],   # concatenated head outputs
    )(x.reshape(BT, C), wslab, wff2, vecs)
    return out2d.reshape(B, T, C)


def make_params(key):
    """Deterministic synthetic parameters (PyTorch layout, Linear weights pre-transposed).

    Per-head q/k/v Linear(C, head_size, bias=False) weights are packed column-wise into
    a single (C, C) matrix per projection, so head h uses columns
    [h*HEAD_SIZE : (h+1)*HEAD_SIZE] — matching torch.cat([head(x) ...], dim=-1).
    """
    C, F4 = N_EMBED, 4 * N_EMBED
    ks = jax.random.split(key, 8)
    s = 0.02
    wq = s * jax.random.normal(ks[0], (C, C), jnp.float32)
    wk = s * jax.random.normal(ks[1], (C, C), jnp.float32)
    wv = s * jax.random.normal(ks[2], (C, C), jnp.float32)
    wproj = s * jax.random.normal(ks[3], (C, C), jnp.float32)
    bproj = s * jax.random.normal(ks[4], (1, C), jnp.float32)
    wff1 = s * jax.random.normal(ks[5], (C, F4), jnp.float32)
    bff1 = s * jax.random.normal(ks[6], (1, F4), jnp.float32)
    wff2 = s * jax.random.normal(ks[7], (F4, C), jnp.float32)
    bff2 = jnp.zeros((1, C), jnp.float32)
    g1 = jnp.ones((1, C), jnp.float32)
    b1 = jnp.zeros((1, C), jnp.float32)
    g2 = jnp.ones((1, C), jnp.float32)
    b2 = jnp.zeros((1, C), jnp.float32)
    return (wq, wk, wv, wproj, bproj, wff1, bff1, wff2, bff2, g1, b1, g2, b2)


def reference_jax(x, params):
    """Pure-JAX reference mirroring the PyTorch forward (dropout = identity)."""
    (wq, wk, wv, wproj, bproj, wff1, bff1, wff2, bff2, g1, b1, g2, b2) = params
    B, T, C = x.shape
    hs = C // N_HEADS

    def ln(v, g, b):
        m = jnp.mean(v, axis=-1, keepdims=True)
        var = jnp.mean((v - m) ** 2, axis=-1, keepdims=True)
        return (v - m) / jnp.sqrt(var + LN_EPS) * g + b

    x1 = ln(x, g1[0], b1[0])
    q = x1 @ wq
    k = x1 @ wk
    v = x1 @ wv
    mask = jnp.tril(jnp.ones((T, T), bool))
    outs = []
    for h in range(N_HEADS):
        qh, kh, vh = (a[..., h * hs:(h + 1) * hs] for a in (q, k, v))
        s = jnp.einsum('btd,bsd->bts', qh, kh) * C ** (-0.5)
        s = jnp.where(mask, s, -jnp.inf)
        p = jax.nn.softmax(s, axis=-1)
        outs.append(jnp.einsum('bts,bsd->btd', p, vh))
    att = jnp.concatenate(outs, axis=-1)
    x2 = x1 + (att @ wproj + bproj[0])
    x3 = ln(x2, g2[0], b2[0])
    ff = jnp.maximum(x3 @ wff1 + bff1[0], 0.0) @ wff2 + bff2[0]
    return x3 + ff


if __name__ == "__main__":
    key = jax.random.PRNGKey(0)
    kx, kp = jax.random.split(key)
    x = jax.random.normal(kx, (BATCH, CONTEXT_LEN, N_EMBED), jnp.float32)
    params = make_params(kp)

    packed = jax.block_until_ready(prep_params(params))   # one-time, outside hot path

    out = jax.block_until_ready(transformer_block(x, *packed))
    ref = reference_jax(x, params)

    assert out.shape == (BATCH, CONTEXT_LEN, N_EMBED)
    err = float(jnp.max(jnp.abs(out - ref)))
    assert jnp.allclose(out, ref, atol=2e-3, rtol=2e-3), f"mismatch: max abs err {err}"
    print("KERNEL_OK")
</pallas_src>

<mosaic_0001>
module attributes {stable_mosaic.version = 11 : i64} {
  func.func @transformer_block_kernel(%arg0: memref<16x32xf32, #tpu.memory_space<vmem>>, %arg1: memref<32x384xf32, #tpu.memory_space<vmem>>, %arg2: memref<128x32xf32, #tpu.memory_space<vmem>>, %arg3: memref<8x128xf32, #tpu.memory_space<vmem>>, %arg4: memref<16x32xf32, #tpu.memory_space<vmem>>, %arg5: memref<16x32xf32, #tpu.memory_space<vmem>>) attributes {dimension_semantics = [], scalar_prefetch = 0 : i64, scratch_operands = 1 : i64, tpu.core_type = #tpu.core_type<tc>} {
    %c0 = arith.constant 0 : index
    %c0_0 = arith.constant 0 : index
    %0 = vector.load %arg0[%c0, %c0_0] : memref<16x32xf32, #tpu.memory_space<vmem>>, vector<16x32xf32>
    %c0_1 = arith.constant 0 : index
    %c0_2 = arith.constant 0 : index
    %1 = vector.load %arg3[%c0_1, %c0_2] : memref<8x128xf32, #tpu.memory_space<vmem>>, vector<8x128xf32>
    %2 = vector.extract_strided_slice %1 {offsets = [0, 0], sizes = [1, 32], strides = [1, 1]} : vector<8x128xf32> to vector<1x32xf32>
    %3 = vector.extract_strided_slice %1 {offsets = [1, 0], sizes = [1, 32], strides = [1, 1]} : vector<8x128xf32> to vector<1x32xf32>
    %4 = vector.extract_strided_slice %1 {offsets = [2, 0], sizes = [1, 32], strides = [1, 1]} : vector<8x128xf32> to vector<1x32xf32>
    %5 = vector.extract_strided_slice %1 {offsets = [3, 0], sizes = [1, 32], strides = [1, 1]} : vector<8x128xf32> to vector<1x32xf32>
    %6 = vector.extract_strided_slice %1 {offsets = [4, 0], sizes = [1, 32], strides = [1, 1]} : vector<8x128xf32> to vector<1x32xf32>
    %7 = vector.extract_strided_slice %1 {offsets = [5, 0], sizes = [1, 32], strides = [1, 1]} : vector<8x128xf32> to vector<1x32xf32>
    %8 = vector.extract_strided_slice %1 {offsets = [6, 0], sizes = [1, 128], strides = [1, 1]} : vector<8x128xf32> to vector<1x128xf32>
    %cst = arith.constant dense<0.000000e+00> : vector<16xf32>
    %9 = vector.multi_reduction <add>, %0, %cst [1] : vector<16x32xf32> to vector<16xf32>
    %10 = vector.shape_cast %9 : vector<16xf32> to vector<16x1xf32>
    %cst_3 = arith.constant 3.200000e+01 : f32
    %11 = vector.broadcast %cst_3 : f32 to vector<16x1xf32>
    %12 = arith.divf %10, %11 : vector<16x1xf32>
    %13 = vector.broadcast %12 : vector<16x1xf32> to vector<16x32xf32>
    %14 = arith.subf %0, %13 : vector<16x32xf32>
    %15 = arith.mulf %14, %14 : vector<16x32xf32>
    %cst_4 = arith.constant dense<0.000000e+00> : vector<16xf32>
    %16 = vector.multi_reduction <add>, %15, %cst_4 [1] : vector<16x32xf32> to vector<16xf32>
    %17 = vector.shape_cast %16 : vector<16xf32> to vector<16x1xf32>
    %cst_5 = arith.constant 3.200000e+01 : f32
    %18 = vector.broadcast %cst_5 : f32 to vector<16x1xf32>
    %19 = arith.divf %17, %18 : vector<16x1xf32>
    %cst_6 = arith.constant 9.99999974E-6 : f32
    %20 = vector.broadcast %cst_6 : f32 to vector<16x1xf32>
    %21 = arith.addf %19, %20 : vector<16x1xf32>
    %22 = math.rsqrt %21 : vector<16x1xf32>
    %23 = vector.broadcast %22 : vector<16x1xf32> to vector<16x32xf32>
    %24 = arith.mulf %14, %23 : vector<16x32xf32>
    %25 = vector.broadcast %2 : vector<1x32xf32> to vector<16x32xf32>
    %26 = arith.mulf %24, %25 : vector<16x32xf32>
    %27 = vector.broadcast %3 : vector<1x32xf32> to vector<16x32xf32>
    %28 = arith.addf %26, %27 : vector<16x32xf32>
    %c0_7 = arith.constant 0 : index
    %c0_8 = arith.constant 0 : index
    %29 = vector.load %arg1[%c0_7, %c0_8] : memref<32x384xf32, #tpu.memory_space<vmem>>, vector<32x128xf32>
    %cst_9 = arith.constant dense<0.000000e+00> : vector<16x128xf32>
    %30 = tpu.matmul %28, %29, %cst_9 {dimension_numbers = #tpu.dot_dimension_numbers<[1], [0], [0], [1], [0, 0, 1, 1], [], []>} : vector<16x32xf32>, vector<32x128xf32>, vector<16x128xf32> -> vector<16x128xf32>
    %31 = vector.extract_strided_slice %30 {offsets = [0, 0], sizes = [16, 32], strides = [1, 1]} : vector<16x128xf32> to vector<16x32xf32>
    %32 = vector.extract_strided_slice %30 {offsets = [0, 32], sizes = [16, 32], strides = [1, 1]} : vector<16x128xf32> to vector<16x32xf32>
    %33 = vector.extract_strided_slice %30 {offsets = [0, 64], sizes = [16, 32], strides = [1, 1]} : vector<16x128xf32> to vector<16x32xf32>
    %34 = tpu.iota {dimensions = array<i32: 0>} : vector<16x16xi32>
    %35 = tpu.iota {dimensions = array<i32: 1>} : vector<16x16xi32>
    %36 = arith.sitofp %34 : vector<16x16xi32> to vector<16x16xf32>
    %cst_10 = arith.constant 5.000000e-01 : f32
    %37 = vector.broadcast %cst_10 : f32 to vector<16x16xf32>
    %38 = arith.addf %36, %37 : vector<16x16xf32>
    %cst_11 = arith.constant 1.250000e-01 : f32
    %39 = vector.broadcast %cst_11 : f32 to vector<16x16xf32>
    %40 = arith.mulf %38, %39 : vector<16x16xf32>
    %41 = math.floor %40 : vector<16x16xf32>
    %42 = arith.sitofp %35 : vector<16x16xi32> to vector<16x16xf32>
    %cst_12 = arith.constant 5.000000e-01 : f32
    %43 = vector.broadcast %cst_12 : f32 to vector<16x16xf32>
    %44 = arith.addf %42, %43 : vector<16x16xf32>
    %cst_13 = arith.constant 1.250000e-01 : f32
    %45 = vector.broadcast %cst_13 : f32 to vector<16x16xf32>
    %46 = arith.mulf %44, %45 : vector<16x16xf32>
    %47 = math.floor %46 : vector<16x16xf32>
    %48 = arith.cmpi sge, %34, %35 : vector<16x16xi32>
    %49 = arith.cmpf oeq, %41, %47 : vector<16x16xf32>
    %50 = arith.andi %48, %49 : vector<16x16xi1>
    %cst_14 = arith.constant 0.000000e+00 : f32
    %cst_15 = arith.constant -1.000000e+30 : f32
    %51 = vector.broadcast %cst_14 : f32 to vector<16x16xf32>
    %52 = vector.broadcast %cst_15 : f32 to vector<16x16xf32>
    %53 = arith.select %50, %51, %52 : vector<16x16xi1>, vector<16x16xf32>
    %cst_16 = arith.constant 1.000000e+00 : f32
    %54 = vector.broadcast %cst_16 : f32 to vector<16x16xf32>
    %55 = vector.extract_strided_slice %31 {offsets = [0, 0], sizes = [16, 8], strides = [1, 1]} : vector<16x32xf32> to vector<16x8xf32>
    %56 = vector.extract_strided_slice %32 {offsets = [0, 0], sizes = [16, 8], strides = [1, 1]} : vector<16x32xf32> to vector<16x8xf32>
    %cst_17 = arith.constant dense<0.000000e+00> : vector<16x16xf32>
    %57 = tpu.matmul %55, %56, %cst_17 {dimension_numbers = #tpu.dot_dimension_numbers<[1], [1], [0], [0], [0, 0, 1, 0], [], []>} : vector<16x8xf32>, vector<16x8xf32>, vector<16x16xf32> -> vector<16x16xf32>
    %58 = arith.addf %57, %53 : vector<16x16xf32>
    %cst_18 = arith.constant dense<0xFF800000> : vector<16xf32>
    %59 = vector.multi_reduction <maximumf>, %58, %cst_18 [1] : vector<16x16xf32> to vector<16xf32>
    %60 = vector.shape_cast %59 : vector<16xf32> to vector<16x1xf32>
    %61 = vector.broadcast %60 : vector<16x1xf32> to vector<16x16xf32>
    %62 = arith.subf %58, %61 : vector<16x16xf32>
    %63 = math.exp %62 : vector<16x16xf32>
    %cst_19 = arith.constant dense<0.000000e+00> : vector<16x16xf32>
    %64 = tpu.matmul %63, %54, %cst_19 {dimension_numbers = #tpu.dot_dimension_numbers<[1], [0], [0], [1], [0, 0, 1, 1], [], []>} : vector<16x16xf32>, vector<16x16xf32>, vector<16x16xf32> -> vector<16x16xf32>
    %65 = tpu.reciprocal %64 {approx = true} : vector<16x16xf32> -> vector<16x16xf32>
    %66 = arith.mulf %64, %65 : vector<16x16xf32>
    %cst_20 = arith.constant 2.000000e+00 : f32
    %67 = vector.broadcast %cst_20 : f32 to vector<16x16xf32>
    %68 = arith.subf %67, %66 : vector<16x16xf32>
    %69 = arith.mulf %65, %68 : vector<16x16xf32>
    %70 = arith.mulf %63, %69 : vector<16x16xf32>
    %71 = vector.extract_strided_slice %33 {offsets = [0, 0], sizes = [16, 8], strides = [1, 1]} : vector<16x32xf32> to vector<16x8xf32>
    %cst_21 = arith.constant dense<0.000000e+00> : vector<16x8xf32>
    %72 = tpu.matmul %70, %71, %cst_21 {dimension_numbers = #tpu.dot_dimension_numbers<[1], [0], [0], [1], [0, 0, 1, 1], [], []>} : vector<16x16xf32>, vector<16x8xf32>, vector<16x8xf32> -> vector<16x8xf32>
    %c0_22 = arith.constant 0 : index
    %c0_23 = arith.constant 0 : index
    %73 = vector.load %arg5[%c0_22, %c0_23] : memref<16x32xf32, #tpu.memory_space<vmem>>, vector<16x8xf32>
    tpu.vector_store %arg5[%c0_22, %c0_23], %72 {strides = array<i32>} : memref<16x32xf32, #tpu.memory_space<vmem>>, vector<16x8xf32>,
    %74 = vector.extract_strided_slice %31 {offsets = [0, 8], sizes = [16, 8], strides = [1, 1]} : vector<16x32xf32> to vector<16x8xf32>
    %75 = vector.extract_strided_slice %32 {offsets = [0, 8], sizes = [16, 8], strides = [1, 1]} : vector<16x32xf32> to vector<16x8xf32>
    %cst_24 = arith.constant dense<0.000000e+00> : vector<16x16xf32>
    %76 = tpu.matmul %74, %75, %cst_24 {dimension_numbers = #tpu.dot_dimension_numbers<[1], [1], [0], [0], [0, 0, 1, 0], [], []>} : vector<16x8xf32>, vector<16x8xf32>, vector<16x16xf32> -> vector<16x16xf32>
    %77 = arith.addf %76, %53 : vector<16x16xf32>
    %cst_25 = arith.constant dense<0xFF800000> : vector<16xf32>
    %78 = vector.multi_reduction <maximumf>, %77, %cst_25 [1] : vector<16x16xf32> to vector<16xf32>
    %79 = vector.shape_cast %78 : vector<16xf32> to vector<16x1xf32>
    %80 = vector.broadcast %79 : vector<16x1xf32> to vector<16x16xf32>
    %81 = arith.subf %77, %80 : vector<16x16xf32>
    %82 = math.exp %81 : vector<16x16xf32>
    %cst_26 = arith.constant dense<0.000000e+00> : vector<16x16xf32>
    %83 = tpu.matmul %82, %54, %cst_26 {dimension_numbers = #tpu.dot_dimension_numbers<[1], [0], [0], [1], [0, 0, 1, 1], [], []>} : vector<16x16xf32>, vector<16x16xf32>, vector<16x16xf32> -> vector<16x16xf32>
    %84 = tpu.reciprocal %83 {approx = true} : vector<16x16xf32> -> vector<16x16xf32>
    %85 = arith.mulf %83, %84 : vector<16x16xf32>
    %cst_27 = arith.constant 2.000000e+00 : f32
    %86 = vector.broadcast %cst_27 : f32 to vector<16x16xf32>
    %87 = arith.subf %86, %85 : vector<16x16xf32>
    %88 = arith.mulf %84, %87 : vector<16x16xf32>
    %89 = arith.mulf %82, %88 : vector<16x16xf32>
    %90 = vector.extract_strided_slice %33 {offsets = [0, 8], sizes = [16, 8], strides = [1, 1]} : vector<16x32xf32> to vector<16x8xf32>
    %cst_28 = arith.constant dense<0.000000e+00> : vector<16x8xf32>
    %91 = tpu.matmul %89, %90, %cst_28 {dimension_numbers = #tpu.dot_dimension_numbers<[1], [0], [0], [1], [0, 0, 1, 1], [], []>} : vector<16x16xf32>, vector<16x8xf32>, vector<16x8xf32> -> vector<16x8xf32>
    %c0_29 = arith.constant 0 : index
    %c8 = arith.constant 8 : index
    %92 = vector.load %arg5[%c0_29, %c8] : memref<16x32xf32, #tpu.memory_space<vmem>>, vector<16x8xf32>
    tpu.vector_store %arg5[%c0_29, %c8], %91 {strides = array<i32>} : memref<16x32xf32, #tpu.memory_space<vmem>>, vector<16x8xf32>,
    %93 = vector.extract_strided_slice %31 {offsets = [0, 16], sizes = [16, 8], strides = [1, 1]} : vector<16x32xf32> to vector<16x8xf32>
    %94 = vector.extract_strided_slice %32 {offsets = [0, 16], sizes = [16, 8], strides = [1, 1]} : vector<16x32xf32> to vector<16x8xf32>
    %cst_30 = arith.constant dense<0.000000e+00> : vector<16x16xf32>
    %95 = tpu.matmul %93, %94, %cst_30 {dimension_numbers = #tpu.dot_dimension_numbers<[1], [1], [0], [0], [0, 0, 1, 0], [], []>} : vector<16x8xf32>, vector<16x8xf32>, vector<16x16xf32> -> vector<16x16xf32>
    %96 = arith.addf %95, %53 : vector<16x16xf32>
    %cst_31 = arith.constant dense<0xFF800000> : vector<16xf32>
    %97 = vector.multi_reduction <maximumf>, %96, %cst_31 [1] : vector<16x16xf32> to vector<16xf32>
    %98 = vector.shape_cast %97 : vector<16xf32> to vector<16x1xf32>
    %99 = vector.broadcast %98 : vector<16x1xf32> to vector<16x16xf32>
    %100 = arith.subf %96, %99 : vector<16x16xf32>
    %101 = math.exp %100 : vector<16x16xf32>
    %cst_32 = arith.constant dense<0.000000e+00> : vector<16x16xf32>
    %102 = tpu.matmul %101, %54, %cst_32 {dimension_numbers = #tpu.dot_dimension_numbers<[1], [0], [0], [1], [0, 0, 1, 1], [], []>} : vector<16x16xf32>, vector<16x16xf32>, vector<16x16xf32> -> vector<16x16xf32>
    %103 = tpu.reciprocal %102 {approx = true} : vector<16x16xf32> -> vector<16x16xf32>
    %104 = arith.mulf %102, %103 : vector<16x16xf32>
    %cst_33 = arith.constant 2.000000e+00 : f32
    %105 = vector.broadcast %cst_33 : f32 to vector<16x16xf32>
    %106 = arith.subf %105, %104 : vector<16x16xf32>
    %107 = arith.mulf %103, %106 : vector<16x16xf32>
    %108 = arith.mulf %101, %107 : vector<16x16xf32>
    %109 = vector.extract_strided_slice %33 {offsets = [0, 16], sizes = [16, 8], strides = [1, 1]} : vector<16x32xf32> to vector<16x8xf32>
    %cst_34 = arith.constant dense<0.000000e+00> : vector<16x8xf32>
    %110 = tpu.matmul %108, %109, %cst_34 {dimension_numbers = #tpu.dot_dimension_numbers<[1], [0], [0], [1], [0, 0, 1, 1], [], []>} : vector<16x16xf32>, vector<16x8xf32>, vector<16x8xf32> -> vector<16x8xf32>
    %c0_35 = arith.constant 0 : index
    %c16 = arith.constant 16 : index
    %111 = vector.load %arg5[%c0_35, %c16] : memref<16x32xf32, #tpu.memory_space<vmem>>, vector<16x8xf32>
    tpu.vector_store %arg5[%c0_35, %c16], %110 {strides = array<i32>} : memref<16x32xf32, #tpu.memory_space<vmem>>, vector<16x8xf32>,
    %112 = vector.extract_strided_slice %31 {offsets = [0, 24], sizes = [16, 8], strides = [1, 1]} : vector<16x32xf32> to vector<16x8xf32>
    %113 = vector.extract_strided_slice %32 {offsets = [0, 24], sizes = [16, 8], strides = [1, 1]} : vector<16x32xf32> to vector<16x8xf32>
    %cst_36 = arith.constant dense<0.000000e+00> : vector<16x16xf32>
    %114 = tpu.matmul %112, %113, %cst_36 {dimension_numbers = #tpu.dot_dimension_numbers<[1], [1], [0], [0], [0, 0, 1, 0], [], []>} : vector<16x8xf32>, vector<16x8xf32>, vector<16x16xf32> -> vector<16x16xf32>
    %115 = arith.addf %114, %53 : vector<16x16xf32>
    %cst_37 = arith.constant dense<0xFF800000> : vector<16xf32>
    %116 = vector.multi_reduction <maximumf>, %115, %cst_37 [1] : vector<16x16xf32> to vector<16xf32>
    %117 = vector.shape_cast %116 : vector<16xf32> to vector<16x1xf32>
    %118 = vector.broadcast %117 : vector<16x1xf32> to vector<16x16xf32>
    %119 = arith.subf %115, %118 : vector<16x16xf32>
    %120 = math.exp %119 : vector<16x16xf32>
    %cst_38 = arith.constant dense<0.000000e+00> : vector<16x16xf32>
    %121 = tpu.matmul %120, %54, %cst_38 {dimension_numbers = #tpu.dot_dimension_numbers<[1], [0], [0], [1], [0, 0, 1, 1], [], []>} : vector<16x16xf32>, vector<16x16xf32>, vector<16x16xf32> -> vector<16x16xf32>
    %122 = tpu.reciprocal %121 {approx = true} : vector<16x16xf32> -> vector<16x16xf32>
    %123 = arith.mulf %121, %122 : vector<16x16xf32>
    %cst_39 = arith.constant 2.000000e+00 : f32
    %124 = vector.broadcast %cst_39 : f32 to vector<16x16xf32>
    %125 = arith.subf %124, %123 : vector<16x16xf32>
    %126 = arith.mulf %122, %125 : vector<16x16xf32>
    %127 = arith.mulf %120, %126 : vector<16x16xf32>
    %128 = vector.extract_strided_slice %33 {offsets = [0, 24], sizes = [16, 8], strides = [1, 1]} : vector<16x32xf32> to vector<16x8xf32>
    %cst_40 = arith.constant dense<0.000000e+00> : vector<16x8xf32>
    %129 = tpu.matmul %127, %128, %cst_40 {dimension_numbers = #tpu.dot_dimension_numbers<[1], [0], [0], [1], [0, 0, 1, 1], [], []>} : vector<16x16xf32>, vector<16x8xf32>, vector<16x8xf32> -> vector<16x8xf32>
    %c0_41 = arith.constant 0 : index
    %c24 = arith.constant 24 : index
    %130 = vector.load %arg5[%c0_41, %c24] : memref<16x32xf32, #tpu.memory_space<vmem>>, vector<16x8xf32>
    tpu.vector_store %arg5[%c0_41, %c24], %129 {strides = array<i32>} : memref<16x32xf32, #tpu.memory_space<vmem>>, vector<16x8xf32>,
    %c0_42 = arith.constant 0 : index
    %c256 = arith.constant 256 : index
    %131 = vector.load %arg1[%c0_42, %c256] : memref<32x384xf32, #tpu.memory_space<vmem>>, vector<32x32xf32>
    %c0_43 = arith.constant 0 : index
    %c0_44 = arith.constant 0 : index
    %132 = vector.load %arg5[%c0_43, %c0_44] : memref<16x32xf32, #tpu.memory_space<vmem>>, vector<16x32xf32>
    %cst_45 = arith.constant dense<0.000000e+00> : vector<16x32xf32>
    %133 = tpu.matmul %132, %131, %cst_45 {dimension_numbers = #tpu.dot_dimension_numbers<[1], [0], [0], [1], [0, 0, 1, 1], [], []>} : vector<16x32xf32>, vector<32x32xf32>, vector<16x32xf32> -> vector<16x32xf32>
    %134 = arith.addf %28, %133 : vector<16x32xf32>
    %135 = vector.broadcast %6 : vector<1x32xf32> to vector<16x32xf32>
    %136 = arith.addf %134, %135 : vector<16x32xf32>
    %cst_46 = arith.constant dense<0.000000e+00> : vector<16xf32>
    %137 = vector.multi_reduction <add>, %136, %cst_46 [1] : vector<16x32xf32> to vector<16xf32>
    %138 = vector.shape_cast %137 : vector<16xf32> to vector<16x1xf32>
    %cst_47 = arith.constant 3.200000e+01 : f32
    %139 = vector.broadcast %cst_47 : f32 to vector<16x1xf32>
    %140 = arith.divf %138, %139 : vector<16x1xf32>
    %141 = vector.broadcast %140 : vector<16x1xf32> to vector<16x32xf32>
    %142 = arith.subf %136, %141 : vector<16x32xf32>
    %143 = arith.mulf %142, %142 : vector<16x32xf32>
    %cst_48 = arith.constant dense<0.000000e+00> : vector<16xf32>
    %144 = vector.multi_reduction <add>, %143, %cst_48 [1] : vector<16x32xf32> to vector<16xf32>
    %145 = vector.shape_cast %144 : vector<16xf32> to vector<16x1xf32>
    %cst_49 = arith.constant 3.200000e+01 : f32
    %146 = vector.broadcast %cst_49 : f32 to vector<16x1xf32>
    %147 = arith.divf %145, %146 : vector<16x1xf32>
    %cst_50 = arith.constant 9.99999974E-6 : f32
    %148 = vector.broadcast %cst_50 : f32 to vector<16x1xf32>
    %149 = arith.addf %147, %148 : vector<16x1xf32>
    %150 = math.rsqrt %149 : vector<16x1xf32>
    %151 = vector.broadcast %150 : vector<16x1xf32> to vector<16x32xf32>
    %152 = arith.mulf %142, %151 : vector<16x32xf32>
    %153 = vector.broadcast %4 : vector<1x32xf32> to vector<16x32xf32>
    %154 = arith.mulf %152, %153 : vector<16x32xf32>
    %155 = vector.broadcast %5 : vector<1x32xf32> to vector<16x32xf32>
    %156 = arith.addf %154, %155 : vector<16x32xf32>
    %c0_51 = arith.constant 0 : index
    %c128 = arith.constant 128 : index
    %157 = vector.load %arg1[%c0_51, %c128] : memref<32x384xf32, #tpu.memory_space<vmem>>, vector<32x128xf32>
    %cst_52 = arith.constant dense<0.000000e+00> : vector<16x128xf32>
    %158 = tpu.matmul %156, %157, %cst_52 {dimension_numbers = #tpu.dot_dimension_numbers<[1], [0], [0], [1], [0, 0, 1, 1], [], []>} : vector<16x32xf32>, vector<32x128xf32>, vector<16x128xf32> -> vector<16x128xf32>
    %159 = vector.broadcast %8 : vector<1x128xf32> to vector<16x128xf32>
    %160 = arith.addf %158, %159 : vector<16x128xf32>
    %cst_53 = arith.constant 0.000000e+00 : f32
    %161 = vector.broadcast %cst_53 : f32 to vector<16x128xf32>
    %162 = arith.maximumf %160, %161 : vector<16x128xf32>
    %c0_54 = arith.constant 0 : index
    %c0_55 = arith.constant 0 : index
    %163 = vector.load %arg2[%c0_54, %c0_55] : memref<128x32xf32, #tpu.memory_space<vmem>>, vector<128x32xf32>
    %cst_56 = arith.constant dense<0.000000e+00> : vector<16x32xf32>
    %164 = tpu.matmul %162, %163, %cst_56 {dimension_numbers = #tpu.dot_dimension_numbers<[1], [0], [0], [1], [0, 0, 1, 1], [], []>} : vector<16x128xf32>, vector<128x32xf32>, vector<16x32xf32> -> vector<16x32xf32>
    %165 = vector.broadcast %7 : vector<1x32xf32> to vector<16x32xf32>
    %166 = arith.addf %164, %165 : vector<16x32xf32>
    %167 = arith.addf %156, %166 : vector<16x32xf32>
    %c0_57 = arith.constant 0 : index
    %c0_58 = arith.constant 0 : index
    %168 = vector.load %arg4[%c0_57, %c0_58] : memref<16x32xf32, #tpu.memory_space<vmem>>, vector<16x32xf32>
    tpu.vector_store %arg4[%c0_57, %c0_58], %167 {strides = array<i32>} : memref<16x32xf32, #tpu.memory_space<vmem>>, vector<16x32xf32>,
    return
  }
}

</mosaic_0001>

<llo_original>
// kernel: transformer_block.1
$region0: #{transformer_block.1}
  #allocation0 [shape = 'u32[]', space=smem, size = 0x4, offset = 0x4, fixed_abs, tag = 'smem constant byte address 0x4 - core index']
  #allocation1 [shape = 'u32[72,128]{1,0:T(1,128)}', space=vmem, size = 0x9000, scoped, tag = 'internal scratch']
  #allocation2 [shape = 'f32[16,32]{1,0:T(8,128)}', space=vmem, size = 0x2000, scoped, tag = 'scratch operand']
  %s0 = inlined_call_operand.vmem [shape: f32[16,32], index: 0, kind: input, shape index: {}]
  %s1 = inlined_call_operand.vmem [shape: f32[32,384], index: 1, kind: input, shape index: {}]
  %s2 = inlined_call_operand.vmem [shape: f32[128,32], index: 2, kind: input, shape index: {}]
  %s3 = inlined_call_operand.vmem [shape: f32[8,128], index: 3, kind: input, shape index: {}]
  %s4 = inlined_call_operand.hbm [shape: f32[16,32], index: 4, kind: output, shape index: {}]
  %s5 = sld [smem:[#allocation0]]
  $region26: #{transformer_block.1} parent=0
    _
  %s7 = ssub.s32 1, %s5
  %s8 = scalar_select 0, %s7, %s5
  $region1: #{transformer_block.1} parent=0
    #allocation3 [shape = 'u8[8192]{0}', space=vmem, size = 0x2000, scoped, tag = 'output window, operand 0, single buffered']
    #allocation4 [shape = 's32[1]{0}', space=sflag, size = 0x4, scoped, tag = 'scoped memory for transformer_block.1']
    %9 = vsyncpa [#allocation4], 0
    // Predicated region
    $region2: #{transformer_block.1} parent=1 // pred_check
      _
    $region3: #{transformer_block.1} parent=1 // pred_check_branch
      %11 = sbr.rel (0) target = $region5
    $region4: #{transformer_block.1} parent=1 // pred_region
      _
    $region5: #{transformer_block.1} parent=1 // pred_fallthru
      _
    // Predicated region
    $region6: #{transformer_block.1} parent=1 // pred_check
      _
    $region7: #{transformer_block.1} parent=1 // pred_check_branch
      %13 = sbr.rel (0) target = $region9
    $region8: #{transformer_block.1} parent=1 // pred_region
      _
    $region9: #{transformer_block.1} parent=1 // pred_fallthru
      _
    // Predicated region
    $region10: #{transformer_block.1} parent=1 // pred_check
      _
    $region11: #{transformer_block.1} parent=1 // pred_check_branch
      %15 = sbr.rel (0) target = $region13
    $region12: #{transformer_block.1} parent=1 // pred_region
      _
    $region13: #{transformer_block.1} parent=1 // pred_fallthru
      _
    // Predicated region
    $region14: #{transformer_block.1} parent=1 // pred_check
      _
    $region15: #{transformer_block.1} parent=1 // pred_check_branch
      %17 = sbr.rel (0) target = $region17
    $region16: #{transformer_block.1} parent=1 // pred_region
      _
    $region17: #{transformer_block.1} parent=1 // pred_fallthru
      _
    %v18 = vld [vmem:[%s0] sm:$0xff]
    %v19 = vld [vmem:[%s0 + $0x8] sm:$0xff]
    %v20 = vld [vmem:[%s3] sm:$0xff]
    %vm21 = vcmask 261120
    %v22 = vsel %vm21, %v18, 0.0
    %23 = vadd.xlane.f32.xlu0 %v22
    %v24 = vpop.xlane.xlu0 %23
    %v25 = vsel %vm21, %v19, 0.0
    %26 = vadd.xlane.f32.xlu0 %v25
    %v27 = vpop.xlane.xlu0 %26
    %v28 = vrcp.pop 32.0
    %v29 = vmul.f32 32.0, %v28
    %v30 = vsub.f32 1.0, %v29
    %v31 = vmul.f32 %v28, %v30
    %v32 = vadd.f32 %v28, %v31
    %vm33 = vweird.f32 %v28
    %v34 = vsel %vm33, %v28, %v32
    %v35 = vmul.f32 %v24, %v34
    %v36 = vmul.f32 %v27, %v34
    %v37 = vsub.f32 %v18, %v35
    %v38 = vsub.f32 %v19, %v36
    %v39 = vmul.f32 %v37, %v37
    %v40 = vmul.f32 %v38, %v38
    %v41 = vsel %vm21, %v39, 0.0
    %42 = vadd.xlane.f32.xlu0 %v41
    %v43 = vpop.xlane.xlu0 %42
    %v44 = vsel %vm21, %v40, 0.0
    %45 = vadd.xlane.f32.xlu0 %v44
    %v46 = vpop.xlane.xlu0 %45
    %v47 = vmul.f32 %v43, %v34
    %v48 = vmul.f32 %v46, %v34
    %v49 = vadd.f32 %v47, 1e-05
    %v50 = vadd.f32 %v48, 1e-05
    %v51 = vrsqrt.pop %v49
    %v52 = vmul.f32 %v51, %v49
    %v53 = vmul.f32 %v52, %v51
    %v54 = vmul.f32 0.5, %v53
    %v55 = vsub.f32 1.5, %v54
    %v56 = vmul.f32 %v51, %v55
    %vm57 = vweird.f32 %v49
    %vm58 = vweird.f32 %v51
    %vm59 = vmor %vm57, %vm58
    %v60 = vsel %vm59, %v51, %v56
    %v61 = vrsqrt.pop %v50
    %v62 = vmul.f32 %v61, %v50
    %v63 = vmul.f32 %v62, %v61
    %v64 = vmul.f32 0.5, %v63
    %v65 = vsub.f32 1.5, %v64
    %v66 = vmul.f32 %v61, %v65
    %vm67 = vweird.f32 %v50
    %vm68 = vweird.f32 %v61
    %vm69 = vmor %vm67, %vm68
    %v70 = vsel %vm69, %v61, %v66
    %v71 = vmul.f32 %v37, %v60
    %v72 = vmul.f32 %v38, %v70
    %v73 = vperm.slane %v20, 0
    %v74 = vmul.f32 %v71, %v73
    %v75 = vmul.f32 %v72, %v73
    %v76 = vperm.slane %v20, 1
    %v77 = vadd.f32 %v74, %v76
    %v78 = vadd.f32 %v75, %v76
    %v79 = vld [vmem:[%s1] sm:$0xff]
    %v80 = vld [vmem:[%s1 + $0x18] sm:$0xff]
    %v81 = vld [vmem:[%s1 + $0x30] sm:$0xff]
    %v82 = vld [vmem:[%s1 + $0x48] sm:$0xff]
    %v84 = vsel %vm21, %v77, 0
    %v87 = vsel %vm21, %v78, 0
    %89 = vmatpush.msra.mxu0 0.0
    %90 = vmatpush.msra.mxu0 0.0
    %91 = vmatpush.msra.mxu0 0.0
    %92 = vmatpush.msra.mxu0 0.0
    %93 = vmatpush.msra.mxu0 0.0
    %94 = vmatpush.msra.mxu0 0.0
    %95 = vmatpush.msra.mxu0 0.0
    %96 = vmatpush.msra.mxu0 0.0
    %97 = vmatpush.msra.mxu0 0.0
    %98 = vmatpush.msra.mxu0 0.0
    %99 = vmatpush.msra.mxu0 0.0
    %100 = vmatpush.msra.mxu0 0.0
    %101 = vmatpush.msra.mxu0 %v82
    %102 = vmatpush.msra.mxu0 %v81
    %103 = vmatpush.msra.mxu0 %v80
    %104 = vmatpush.msra.mxu0 %v79
    %105 = vmatmul.f32.gmra.mxu0 %v84
    %v106 = vpop.f32.mrf.mxu0
    %v107 = vadd.f32 0.0, %v106
    %108 = vmatmul.f32.gmra.mxu0 %v87
    %v109 = vpop.f32.mrf.mxu0
    %v110 = vadd.f32 0.0, %v109
    %111 = vdwg.mxu0
    %v112 = vlaneseq
    %v113 = vshrl.u32 %v112, 7
    %v114 = vadd.s32 %v113, 8
    %v115 = vlaneseq
    %v116 = vand.u32 %v115, 127
    %v117 = vcvt.s32.f32 %v113
    %v118 = vcvt.s32.f32 %v114
    %v119 = vadd.f32 %v117, 0.5
    %v120 = vadd.f32 %v118, 0.5
    %v121 = vmul.f32 %v119, 0.125
    %v122 = vmul.f32 %v120, 0.125
    %v123 = vfloor.f32 %v121
    %v124 = vfloor.f32 %v122
    %v125 = vcvt.s32.f32 %v116
    %v126 = vadd.f32 %v125, 0.5
    %v127 = vmul.f32 %v126, 0.125
    %v128 = vfloor.f32 %v127
    %vm129 = vcmp.ge.s32.totalorder %v113, %v116
    %vm130 = vcmp.ge.s32.totalorder %v114, %v116
    %vm131 = vcmp.eq.f32.partialorder %v123, %v128
    %vm132 = vcmp.eq.f32.partialorder %v124, %v128
    %vm133 = vmand %vm129, %vm131
    %vm134 = vmand %vm130, %vm132
    %v135 = vsel %vm133, 0.0, -1e+30
    %v136 = vsel %vm134, 0.0, -1e+30
    %139 = vrot.lane.b32.xlu0 %v107, 96
    %v140 = vpop.permute.xlu0 %139
    %141 = vrot.lane.b32.xlu0 %v110, 96
    %v142 = vpop.permute.xlu0 %141
    %vm143 = vcmask 64512
    %v144 = vsel %vm143, %v107, 0
    %v146 = vsel %vm143, %v110, 0
    %v148 = vsel %vm143, %v140, 0
    %v150 = vsel %vm143, %v142, 0
    %152 = vmatpush.xpose.msra.mxu0 0.0
    %153 = vmatpush.xpose.msra.mxu0 0.0
    %154 = vmatpush.xpose.msra.mxu0 0.0
    %155 = vmatpush.xpose.msra.mxu0 0.0
    %156 = vmatpush.xpose.msra.mxu0 0.0
    %157 = vmatpush.xpose.msra.mxu0 0.0
    %158 = vmatpush.xpose.msra.mxu0 0.0
    %159 = vmatpush.xpose.msra.mxu0 0.0
    %160 = vmatpush.xpose.msra.mxu0 0.0
    %161 = vmatpush.xpose.msra.mxu0 0.0
    %162 = vmatpush.xpose.msra.mxu0 0.0
    %163 = vmatpush.xpose.msra.mxu0 0.0
    %164 = vmatpush.xpose.msra.mxu0 0.0
    %165 = vmatpush.xpose.msra.mxu0 0.0
    %166 = vmatpush.xpose.msra.mxu0 %v150
    %167 = vmatpush.xpose.msra.mxu0 %v148
    %168 = vmatmul.f32.gmra.mxu0 %v144
    %v169 = vpop.f32.mrf.mxu0
    %v170 = vadd.f32 %v135, %v169
    %171 = vmatmul.f32.gmra.mxu0 %v146
    %v172 = vpop.f32.mrf.mxu0
    %v173 = vadd.f32 %v136, %v172
    %174 = vdwg.mxu0
    %vm175 = vcmask 130048
    %v176 = vsel %vm175, %v170, -inf
    %177 = vmax.xlane.f32.xlu0 %v176
    %v178 = vpop.xlane.xlu0 %177
    %v179 = vsel %vm175, %v173, -inf
    %180 = vmax.xlane.f32.xlu0 %v179
    %v181 = vpop.xlane.xlu0 %180
    %v182 = vsub.f32 %v170, %v178
    %v183 = vsub.f32 %v173, %v181
    %v184 = vmul.f32 %v182, 1.442695
    %v185 = vpow.pop %v184
    %v186 = vmul.f32 %v183, 1.442695
    %v187 = vpow.pop %v186
    %v189 = vsel %vm175, %v185, 0
    %v192 = vsel %vm175, %v187, 0
    %194 = vmatpush.msra.mxu0 0.0
    %195 = vmatpush.msra.mxu0 0.0
    %196 = vmatpush.msra.mxu0 0.0
    %197 = vmatpush.msra.mxu0 0.0
    %198 = vmatpush.msra.mxu0 0.0
    %199 = vmatpush.msra.mxu0 0.0
    %200 = vmatpush.msra.mxu0 0.0
    %201 = vmatpush.msra.mxu0 0.0
    %202 = vmatpush.msra.mxu0 0.0
    %203 = vmatpush.msra.mxu0 0.0
    %204 = vmatpush.msra.mxu0 0.0
    %205 = vmatpush.msra.mxu0 0.0
    %206 = vmatpush.msra.mxu0 0.0
    %207 = vmatpush.msra.mxu0 0.0
    %208 = vmatpush.msra.mxu0 1.0
    %209 = vmatpush.msra.mxu0 1.0
    %210 = vmatmul.f32.gmra.mxu0 %v189
    %v211 = vpop.f32.mrf.mxu0
    %v212 = vadd.f32 0.0, %v211
    %213 = vmatmul.f32.gmra.mxu0 %v192
    %v214 = vpop.f32.mrf.mxu0
    %v215 = vadd.f32 0.0, %v214
    %216 = vdwg.mxu0
    %v217 = vrcp.pop %v212
    %v218 = vrcp.pop %v215
    %v219 = vmul.f32 %v212, %v217
    %v220 = vmul.f32 %v215, %v218
    %v221 = vsub.f32 2.0, %v219
    %v222 = vsub.f32 2.0, %v220
    %v223 = vmul.f32 %v217, %v221
    %v224 = vmul.f32 %v218, %v222
    %v225 = vmul.f32 %v185, %v223
    %v226 = vmul.f32 %v187, %v224
    %227 = vrot.lane.b32.xlu0 %v107, 64
    %v228 = vpop.permute.xlu0 %227
    %229 = vrot.lane.b32.xlu0 %v110, 64
    %v230 = vpop.permute.xlu0 %229
    %v234 = vsel %vm175, %v225, 0
    %v237 = vsel %vm175, %v226, 0
    %239 = vmatpush.msra.mxu0 0.0
    %240 = vmatpush.msra.mxu0 0.0
    %241 = vmatpush.msra.mxu0 0.0
    %242 = vmatpush.msra.mxu0 0.0
    %243 = vmatpush.msra.mxu0 0.0
    %244 = vmatpush.msra.mxu0 0.0
    %245 = vmatpush.msra.mxu0 0.0
    %246 = vmatpush.msra.mxu0 0.0
    %247 = vmatpush.msra.mxu0 0.0
    %248 = vmatpush.msra.mxu0 0.0
    %249 = vmatpush.msra.mxu0 0.0
    %250 = vmatpush.msra.mxu0 0.0
    %251 = vmatpush.msra.mxu0 0.0
    %252 = vmatpush.msra.mxu0 0.0
    %253 = vmatpush.msra.mxu0 %v230
    %254 = vmatpush.msra.mxu0 %v228
    %255 = vmatmul.f32.gmra.mxu0 %v234
    %v256 = vpop.f32.mrf.mxu0
    %v257 = vadd.f32 0.0, %v256
    %258 = vmatmul.f32.gmra.mxu0 %v237
    %v259 = vpop.f32.mrf.mxu0
    %v260 = vadd.f32 0.0, %v259
    %261 = vdwg.mxu0
    %262 = vst.msk [vmem:[#allocation2] sm:$0xff] %vm143, %v257
    %263 = vst.msk [vmem:[#allocation2 + $0x8] sm:$0xff] %vm143, %v260
    %264 = vrot.lane.b32.xlu0 %v107, 120
    %v265 = vpop.permute.xlu0 %264
    %266 = vrot.lane.b32.xlu0 %v110, 120
    %v267 = vpop.permute.xlu0 %266
    %268 = vrot.lane.b32.xlu0 %v107, 88
    %v269 = vpop.permute.xlu0 %268
    %270 = vrot.lane.b32.xlu0 %v110, 88
    %v271 = vpop.permute.xlu0 %270
    %v272 = vsel %vm143, %v265, 0
    %v274 = vsel %vm143, %v267, 0
    %v276 = vsel %vm143, %v269, 0
    %v278 = vsel %vm143, %v271, 0
    %280 = vmatpush.xpose.msra.mxu0 0.0
    %281 = vmatpush.xpose.msra.mxu0 0.0
    %282 = vmatpush.xpose.msra.mxu0 0.0
    %283 = vmatpush.xpose.msra.mxu0 0.0
    %284 = vmatpush.xpose.msra.mxu0 0.0
    %285 = vmatpush.xpose.msra.mxu0 0.0
    %286 = vmatpush.xpose.msra.mxu0 0.0
    %287 = vmatpush.xpose.msra.mxu0 0.0
    %288 = vmatpush.xpose.msra.mxu0 0.0
    %289 = vmatpush.xpose.msra.mxu0 0.0
    %290 = vmatpush.xpose.msra.mxu0 0.0
    %291 = vmatpush.xpose.msra.mxu0 0.0
    %292 = vmatpush.xpose.msra.mxu0 0.0
    %293 = vmatpush.xpose.msra.mxu0 0.0
    %294 = vmatpush.xpose.msra.mxu0 %v278
    %295 = vmatpush.xpose.msra.mxu0 %v276
    %296 = vmatmul.f32.gmra.mxu0 %v272
    %v297 = vpop.f32.mrf.mxu0
    %v298 = vadd.f32 %v135, %v297
    %299 = vmatmul.f32.gmra.mxu0 %v274
    %v300 = vpop.f32.mrf.mxu0
    %v301 = vadd.f32 %v136, %v300
    %302 = vdwg.mxu0
    %v303 = vsel %vm175, %v298, -inf
    %304 = vmax.xlane.f32.xlu0 %v303
    %v305 = vpop.xlane.xlu0 %304
    %v306 = vsel %vm175, %v301, -inf
    %307 = vmax.xlane.f32.xlu0 %v306
    %v308 = vpop.xlane.xlu0 %307
    %v309 = vsub.f32 %v298, %v305
    %v310 = vsub.f32 %v301, %v308
    %v311 = vmul.f32 %v309, 1.442695
    %v312 = vpow.pop %v311
    %v313 = vmul.f32 %v310, 1.442695
    %v314 = vpow.pop %v313
    %v316 = vsel %vm175, %v312, 0
    %v319 = vsel %vm175, %v314, 0
    %321 = vmatpush.msra.mxu0 0.0
    %322 = vmatpush.msra.mxu0 0.0
    %323 = vmatpush.msra.mxu0 0.0
    %324 = vmatpush.msra.mxu0 0.0
    %325 = vmatpush.msra.mxu0 0.0
    %326 = vmatpush.msra.mxu0 0.0
    %327 = vmatpush.msra.mxu0 0.0
    %328 = vmatpush.msra.mxu0 0.0
    %329 = vmatpush.msra.mxu0 0.0
    %330 = vmatpush.msra.mxu0 0.0
    %331 = vmatpush.msra.mxu0 0.0
    %332 = vmatpush.msra.mxu0 0.0
    %333 = vmatpush.msra.mxu0 0.0
    %334 = vmatpush.msra.mxu0 0.0
    %335 = vmatpush.msra.mxu0 1.0
    %336 = vmatpush.msra.mxu0 1.0
    %337 = vmatmul.f32.gmra.mxu0 %v316
    %v338 = vpop.f32.mrf.mxu0
    %v339 = vadd.f32 0.0, %v338
    %340 = vmatmul.f32.gmra.mxu0 %v319
    %v341 = vpop.f32.mrf.mxu0
    %v342 = vadd.f32 0.0, %v341
    %343 = vdwg.mxu0
    %v344 = vrcp.pop %v339
    %v345 = vrcp.pop %v342
    %v346 = vmul.f32 %v339, %v344
    %v347 = vmul.f32 %v342, %v345
    %v348 = vsub.f32 2.0, %v346
    %v349 = vsub.f32 2.0, %v347
    %v350 = vmul.f32 %v344, %v348
    %v351 = vmul.f32 %v345, %v349
    %v352 = vmul.f32 %v312, %v350
    %v353 = vmul.f32 %v314, %v351
    %354 = vrot.lane.b32.xlu0 %v107, 56
    %v355 = vpop.permute.xlu0 %354
    %356 = vrot.lane.b32.xlu0 %v110, 56
    %v357 = vpop.permute.xlu0 %356
    %v361 = vsel %vm175, %v352, 0
    %v364 = vsel %vm175, %v353, 0
    %366 = vmatpush.msra.mxu0 0.0
    %367 = vmatpush.msra.mxu0 0.0
    %368 = vmatpush.msra.mxu0 0.0
    %369 = vmatpush.msra.mxu0 0.0
    %370 = vmatpush.msra.mxu0 0.0
    %371 = vmatpush.msra.mxu0 0.0
    %372 = vmatpush.msra.mxu0 0.0
    %373 = vmatpush.msra.mxu0 0.0
    %374 = vmatpush.msra.mxu0 0.0
    %375 = vmatpush.msra.mxu0 0.0
    %376 = vmatpush.msra.mxu0 0.0
    %377 = vmatpush.msra.mxu0 0.0
    %378 = vmatpush.msra.mxu0 0.0
    %379 = vmatpush.msra.mxu0 0.0
    %380 = vmatpush.msra.mxu0 %v357
    %381 = vmatpush.msra.mxu0 %v355
    %382 = vmatmul.f32.gmra.mxu0 %v361
    %v383 = vpop.f32.mrf.mxu0
    %v384 = vadd.f32 0.0, %v383
    %385 = vmatmul.f32.gmra.mxu0 %v364
    %v386 = vpop.f32.mrf.mxu0
    %v387 = vadd.f32 0.0, %v386
    %388 = vdwg.mxu0
    %391 = vrot.lane.b32.xlu0 %v384, 8
    %v392 = vpop.permute.xlu0 %391
    %393 = vrot.lane.b32.xlu0 %v387, 8
    %v394 = vpop.permute.xlu0 %393
    %vm397 = vcmask 130112
    %398 = vst.msk [vmem:[#allocation2] sm:$0xff] %vm397, %v392
    %399 = vst.msk [vmem:[#allocation2 + $0x8] sm:$0xff] %vm397, %v394
    %400 = vrot.lane.b32.xlu0 %v107, 112
    %v401 = vpop.permute.xlu0 %400
    %402 = vrot.lane.b32.xlu0 %v110, 112
    %v403 = vpop.permute.xlu0 %402
    %404 = vrot.lane.b32.xlu0 %v107, 80
    %v405 = vpop.permute.xlu0 %404
    %406 = vrot.lane.b32.xlu0 %v110, 80
    %v407 = vpop.permute.xlu0 %406
    %v408 = vsel %vm143, %v401, 0
    %v410 = vsel %vm143, %v403, 0
    %v412 = vsel %vm143, %v405, 0
    %v414 = vsel %vm143, %v407, 0
    %416 = vmatpush.xpose.msra.mxu0 0.0
    %417 = vmatpush.xpose.msra.mxu0 0.0
    %418 = vmatpush.xpose.msra.mxu0 0.0
    %419 = vmatpush.xpose.msra.mxu0 0.0
    %420 = vmatpush.xpose.msra.mxu0 0.0
    %421 = vmatpush.xpose.msra.mxu0 0.0
    %422 = vmatpush.xpose.msra.mxu0 0.0
    %423 = vmatpush.xpose.msra.mxu0 0.0
    %424 = vmatpush.xpose.msra.mxu0 0.0
    %425 = vmatpush.xpose.msra.mxu0 0.0
    %426 = vmatpush.xpose.msra.mxu0 0.0
    %427 = vmatpush.xpose.msra.mxu0 0.0
    %428 = vmatpush.xpose.msra.mxu0 0.0
    %429 = vmatpush.xpose.msra.mxu0 0.0
    %430 = vmatpush.xpose.msra.mxu0 %v414
    %431 = vmatpush.xpose.msra.mxu0 %v412
    %432 = vmatmul.f32.gmra.mxu0 %v408
    %v433 = vpop.f32.mrf.mxu0
    %v434 = vadd.f32 %v135, %v433
    %435 = vmatmul.f32.gmra.mxu0 %v410
    %v436 = vpop.f32.mrf.mxu0
    %v437 = vadd.f32 %v136, %v436
    %438 = vdwg.mxu0
    %v439 = vsel %vm175, %v434, -inf
    %440 = vmax.xlane.f32.xlu0 %v439
    %v441 = vpop.xlane.xlu0 %440
    %v442 = vsel %vm175, %v437, -inf
    %443 = vmax.xlane.f32.xlu0 %v442
    %v444 = vpop.xlane.xlu0 %443
    %v445 = vsub.f32 %v434, %v441
    %v446 = vsub.f32 %v437, %v444
    %v447 = vmul.f32 %v445, 1.442695
    %v448 = vpow.pop %v447
    %v449 = vmul.f32 %v446, 1.442695
    %v450 = vpow.pop %v449
    %v452 = vsel %vm175, %v448, 0
    %v455 = vsel %vm175, %v450, 0
    %457 = vmatpush.msra.mxu0 0.0
    %458 = vmatpush.msra.mxu0 0.0
    %459 = vmatpush.msra.mxu0 0.0
    %460 = vmatpush.msra.mxu0 0.0
    %461 = vmatpush.msra.mxu0 0.0
    %462 = vmatpush.msra.mxu0 0.0
    %463 = vmatpush.msra.mxu0 0.0
    %464 = vmatpush.msra.mxu0 0.0
    %465 = vmatpush.msra.mxu0 0.0
    %466 = vmatpush.msra.mxu0 0.0
    %467 = vmatpush.msra.mxu0 0.0
    %468 = vmatpush.msra.mxu0 0.0
    %469 = vmatpush.msra.mxu0 0.0
    %470 = vmatpush.msra.mxu0 0.0
    %471 = vmatpush.msra.mxu0 1.0
    %472 = vmatpush.msra.mxu0 1.0
    %473 = vmatmul.f32.gmra.mxu0 %v452
    %v474 = vpop.f32.mrf.mxu0
    %v475 = vadd.f32 0.0, %v474
    %476 = vmatmul.f32.gmra.mxu0 %v455
    %v477 = vpop.f32.mrf.mxu0
    %v478 = vadd.f32 0.0, %v477
    %479 = vdwg.mxu0
    %v480 = vrcp.pop %v475
    %v481 = vrcp.pop %v478
    %v482 = vmul.f32 %v475, %v480
    %v483 = vmul.f32 %v478, %v481
    %v484 = vsub.f32 2.0, %v482
    %v485 = vsub.f32 2.0, %v483
    %v486 = vmul.f32 %v480, %v484
    %v487 = vmul.f32 %v481, %v485
    %v488 = vmul.f32 %v448, %v486
    %v489 = vmul.f32 %v450, %v487
    %490 = vrot.lane.b32.xlu0 %v107, 48
    %v491 = vpop.permute.xlu0 %490
    %492 = vrot.lane.b32.xlu0 %v110, 48
    %v493 = vpop.permute.xlu0 %492
    %v497 = vsel %vm175, %v488, 0
    %v500 = vsel %vm175, %v489, 0
    %502 = vmatpush.msra.mxu0 0.0
    %503 = vmatpush.msra.mxu0 0.0
    %504 = vmatpush.msra.mxu0 0.0
    %505 = vmatpush.msra.mxu0 0.0
    %506 = vmatpush.msra.mxu0 0.0
    %507 = vmatpush.msra.mxu0 0.0
    %508 = vmatpush.msra.mxu0 0.0
    %509 = vmatpush.msra.mxu0 0.0
    %510 = vmatpush.msra.mxu0 0.0
    %511 = vmatpush.msra.mxu0 0.0
    %512 = vmatpush.msra.mxu0 0.0
    %513 = vmatpush.msra.mxu0 0.0
    %514 = vmatpush.msra.mxu0 0.0
    %515 = vmatpush.msra.mxu0 0.0
    %516 = vmatpush.msra.mxu0 %v493
    %517 = vmatpush.msra.mxu0 %v491
    %518 = vmatmul.f32.gmra.mxu0 %v497
    %v519 = vpop.f32.mrf.mxu0
    %v520 = vadd.f32 0.0, %v519
    %521 = vmatmul.f32.gmra.mxu0 %v500
    %v522 = vpop.f32.mrf.mxu0
    %v523 = vadd.f32 0.0, %v522
    %524 = vdwg.mxu0
    %527 = vrot.lane.b32.xlu0 %v520, 16
    %v528 = vpop.permute.xlu0 %527
    %529 = vrot.lane.b32.xlu0 %v523, 16
    %v530 = vpop.permute.xlu0 %529
    %vm533 = vcmask 195712
    %534 = vst.msk [vmem:[#allocation2] sm:$0xff] %vm533, %v528
    %535 = vst.msk [vmem:[#allocation2 + $0x8] sm:$0xff] %vm533, %v530
    %536 = vrot.lane.b32.xlu0 %v107, 104
    %v537 = vpop.permute.xlu0 %536
    %538 = vrot.lane.b32.xlu0 %v110, 104
    %v539 = vpop.permute.xlu0 %538
    %540 = vrot.lane.b32.xlu0 %v107, 72
    %v541 = vpop.permute.xlu0 %540
    %542 = vrot.lane.b32.xlu0 %v110, 72
    %v543 = vpop.permute.xlu0 %542
    %v544 = vsel %vm143, %v537, 0
    %v546 = vsel %vm143, %v539, 0
    %v548 = vsel %vm143, %v541, 0
    %v550 = vsel %vm143, %v543, 0
    %552 = vmatpush.xpose.msra.mxu0 0.0
    %553 = vmatpush.xpose.msra.mxu0 0.0
    %554 = vmatpush.xpose.msra.mxu0 0.0
    %555 = vmatpush.xpose.msra.mxu0 0.0
    %556 = vmatpush.xpose.msra.mxu0 0.0
    %557 = vmatpush.xpose.msra.mxu0 0.0
    %558 = vmatpush.xpose.msra.mxu0 0.0
    %559 = vmatpush.xpose.msra.mxu0 0.0
    %560 = vmatpush.xpose.msra.mxu0 0.0
    %561 = vmatpush.xpose.msra.mxu0 0.0
    %562 = vmatpush.xpose.msra.mxu0 0.0
    %563 = vmatpush.xpose.msra.mxu0 0.0
    %564 = vmatpush.xpose.msra.mxu0 0.0
    %565 = vmatpush.xpose.msra.mxu0 0.0
    %566 = vmatpush.xpose.msra.mxu0 %v550
    %567 = vmatpush.xpose.msra.mxu0 %v548
    %568 = vmatmul.f32.gmra.mxu0 %v544
    %v569 = vpop.f32.mrf.mxu0
    %v570 = vadd.f32 %v135, %v569
    %571 = vmatmul.f32.gmra.mxu0 %v546
    %v572 = vpop.f32.mrf.mxu0
    %v573 = vadd.f32 %v136, %v572
    %574 = vdwg.mxu0
    %v575 = vsel %vm175, %v570, -inf
    %576 = vmax.xlane.f32.xlu0 %v575
    %v577 = vpop.xlane.xlu0 %576
    %v578 = vsel %vm175, %v573, -inf
    %579 = vmax.xlane.f32.xlu0 %v578
    %v580 = vpop.xlane.xlu0 %579
    %v581 = vsub.f32 %v570, %v577
    %v582 = vsub.f32 %v573, %v580
    %v583 = vmul.f32 %v581, 1.442695
    %v584 = vpow.pop %v583
    %v585 = vmul.f32 %v582, 1.442695
    %v586 = vpow.pop %v585
    %v588 = vsel %vm175, %v584, 0
    %v591 = vsel %vm175, %v586, 0
    %593 = vmatpush.msra.mxu0 0.0
    %594 = vmatpush.msra.mxu0 0.0
    %595 = vmatpush.msra.mxu0 0.0
    %596 = vmatpush.msra.mxu0 0.0
    %597 = vmatpush.msra.mxu0 0.0
    %598 = vmatpush.msra.mxu0 0.0
    %599 = vmatpush.msra.mxu0 0.0
    %600 = vmatpush.msra.mxu0 0.0
    %601 = vmatpush.msra.mxu0 0.0
    %602 = vmatpush.msra.mxu0 0.0
    %603 = vmatpush.msra.mxu0 0.0
    %604 = vmatpush.msra.mxu0 0.0
    %605 = vmatpush.msra.mxu0 0.0
    %606 = vmatpush.msra.mxu0 0.0
    %607 = vmatpush.msra.mxu0 1.0
    %608 = vmatpush.msra.mxu0 1.0
    %609 = vmatmul.f32.gmra.mxu0 %v588
    %v610 = vpop.f32.mrf.mxu0
    %v611 = vadd.f32 0.0, %v610
    %612 = vmatmul.f32.gmra.mxu0 %v591
    %v613 = vpop.f32.mrf.mxu0
    %v614 = vadd.f32 0.0, %v613
    %615 = vdwg.mxu0
    %v616 = vrcp.pop %v611
    %v617 = vrcp.pop %v614
    %v618 = vmul.f32 %v611, %v616
    %v619 = vmul.f32 %v614, %v617
    %v620 = vsub.f32 2.0, %v618
    %v621 = vsub.f32 2.0, %v619
    %v622 = vmul.f32 %v616, %v620
    %v623 = vmul.f32 %v617, %v621
    %v624 = vmul.f32 %v584, %v622
    %v625 = vmul.f32 %v586, %v623
    %626 = vrot.lane.b32.xlu0 %v107, 40
    %v627 = vpop.permute.xlu0 %626
    %628 = vrot.lane.b32.xlu0 %v110, 40
    %v629 = vpop.permute.xlu0 %628
    %v633 = vsel %vm175, %v624, 0
    %v636 = vsel %vm175, %v625, 0
    %638 = vmatpush.msra.mxu0 0.0
    %639 = vmatpush.msra.mxu0 0.0
    %640 = vmatpush.msra.mxu0 0.0
    %641 = vmatpush.msra.mxu0 0.0
    %642 = vmatpush.msra.mxu0 0.0
    %643 = vmatpush.msra.mxu0 0.0
    %644 = vmatpush.msra.mxu0 0.0
    %645 = vmatpush.msra.mxu0 0.0
    %646 = vmatpush.msra.mxu0 0.0
    %647 = vmatpush.msra.mxu0 0.0
    %648 = vmatpush.msra.mxu0 0.0
    %649 = vmatpush.msra.mxu0 0.0
    %650 = vmatpush.msra.mxu0 0.0
    %651 = vmatpush.msra.mxu0 0.0
    %652 = vmatpush.msra.mxu0 %v629
    %653 = vmatpush.msra.mxu0 %v627
    %654 = vmatmul.f32.gmra.mxu0 %v633
    %v655 = vpop.f32.mrf.mxu0
    %v656 = vadd.f32 0.0, %v655
    %657 = vmatmul.f32.gmra.mxu0 %v636
    %v658 = vpop.f32.mrf.mxu0
    %v659 = vadd.f32 0.0, %v658
    %660 = vdwg.mxu0
    %663 = vrot.lane.b32.xlu0 %v656, 24
    %v664 = vpop.permute.xlu0 %663
    %665 = vrot.lane.b32.xlu0 %v659, 24
    %v666 = vpop.permute.xlu0 %665
    %vm669 = vcmask 261312
    %670 = vst.msk [vmem:[#allocation2] sm:$0xff] %vm669, %v664
    %671 = vst.msk [vmem:[#allocation2 + $0x8] sm:$0xff] %vm669, %v666
    %v672 = vld [vmem:[%s1 + $0x10] sm:$0xff]
    %v673 = vld [vmem:[%s1 + $0x28] sm:$0xff]
    %v674 = vld [vmem:[%s1 + $0x40] sm:$0xff]
    %v675 = vld [vmem:[%s1 + $0x58] sm:$0xff]
    %v676 = vld [vmem:[#allocation2] sm:$0xff]
    %v677 = vld [vmem:[#allocation2 + $0x8] sm:$0xff]
    %v679 = vsel %vm21, %v676, 0
    %v682 = vsel %vm21, %v677, 0
    %684 = vmatpush.msra.mxu0 0.0
    %685 = vmatpush.msra.mxu0 0.0
    %686 = vmatpush.msra.mxu0 0.0
    %687 = vmatpush.msra.mxu0 0.0
    %688 = vmatpush.msra.mxu0 0.0
    %689 = vmatpush.msra.mxu0 0.0
    %690 = vmatpush.msra.mxu0 0.0
    %691 = vmatpush.msra.mxu0 0.0
    %692 = vmatpush.msra.mxu0 0.0
    %693 = vmatpush.msra.mxu0 0.0
    %694 = vmatpush.msra.mxu0 0.0
    %695 = vmatpush.msra.mxu0 0.0
    %696 = vmatpush.msra.mxu0 %v675
    %697 = vmatpush.msra.mxu0 %v674
    %698 = vmatpush.msra.mxu0 %v673
    %699 = vmatpush.msra.mxu0 %v672
    %700 = vmatmul.f32.gmra.mxu0 %v679
    %v701 = vpop.f32.mrf.mxu0
    %v702 = vadd.f32 0.0, %v701
    %703 = vmatmul.f32.gmra.mxu0 %v682
    %v704 = vpop.f32.mrf.mxu0
    %v705 = vadd.f32 0.0, %v704
    %706 = vdwg.mxu0
    %v707 = vadd.f32 %v77, %v702
    %v708 = vadd.f32 %v78, %v705
    %v709 = vperm.slane %v20, 4
    %v710 = vadd.f32 %v707, %v709
    %v711 = vadd.f32 %v708, %v709
    %v712 = vsel %vm21, %v710, 0.0
    %713 = vadd.xlane.f32.xlu0 %v712
    %v714 = vpop.xlane.xlu0 %713
    %v715 = vsel %vm21, %v711, 0.0
    %716 = vadd.xlane.f32.xlu0 %v715
    %v717 = vpop.xlane.xlu0 %716
    %v718 = vmul.f32 %v714, %v34
    %v719 = vmul.f32 %v717, %v34
    %v720 = vsub.f32 %v710, %v718
    %v721 = vsub.f32 %v711, %v719
    %v722 = vmul.f32 %v720, %v720
    %v723 = vmul.f32 %v721, %v721
    %v724 = vsel %vm21, %v722, 0.0
    %725 = vadd.xlane.f32.xlu0 %v724
    %v726 = vpop.xlane.xlu0 %725
    %v727 = vsel %vm21, %v723, 0.0
    %728 = vadd.xlane.f32.xlu0 %v727
    %v729 = vpop.xlane.xlu0 %728
    %v730 = vmul.f32 %v726, %v34
    %v731 = vmul.f32 %v729, %v34
    %v732 = vadd.f32 %v730, 1e-05
    %v733 = vadd.f32 %v731, 1e-05
    %v734 = vrsqrt.pop %v732
    %v735 = vmul.f32 %v734, %v732
    %v736 = vmul.f32 %v735, %v734
    %v737 = vmul.f32 0.5, %v736
    %v738 = vsub.f32 1.5, %v737
    %v739 = vmul.f32 %v734, %v738
    %vm740 = vweird.f32 %v732
    %vm741 = vweird.f32 %v734
    %vm742 = vmor %vm740, %vm741
    %v743 = vsel %vm742, %v734, %v739
    %v744 = vrsqrt.pop %v733
    %v745 = vmul.f32 %v744, %v733
    %v746 = vmul.f32 %v745, %v744
    %v747 = vmul.f32 0.5, %v746
    %v748 = vsub.f32 1.5, %v747
    %v749 = vmul.f32 %v744, %v748
    %vm750 = vweird.f32 %v733
    %vm751 = vweird.f32 %v744
    %vm752 = vmor %vm750, %vm751
    %v753 = vsel %vm752, %v744, %v749
    %v754 = vmul.f32 %v720, %v743
    %v755 = vmul.f32 %v721, %v753
    %v756 = vperm.slane %v20, 2
    %v757 = vmul.f32 %v754, %v756
    %v758 = vmul.f32 %v755, %v756
    %v759 = vperm.slane %v20, 3
    %v760 = vadd.f32 %v757, %v759
    %v761 = vadd.f32 %v758, %v759
    %v762 = vld [vmem:[%s1 + $0x8] sm:$0xff]
    %v763 = vld [vmem:[%s1 + $0x20] sm:$0xff]
    %v764 = vld [vmem:[%s1 + $0x38] sm:$0xff]
    %v765 = vld [vmem:[%s1 + $0x50] sm:$0xff]
    %v766 = vperm.slane %v20, 6
    %v768 = vsel %vm21, %v760, 0
    %v771 = vsel %vm21, %v761, 0
    %773 = vmatpush.msra.mxu0 0.0
    %774 = vmatpush.msra.mxu0 0.0
    %775 = vmatpush.msra.mxu0 0.0
    %776 = vmatpush.msra.mxu0 0.0
    %777 = vmatpush.msra.mxu0 0.0
    %778 = vmatpush.msra.mxu0 0.0
    %779 = vmatpush.msra.mxu0 0.0
    %780 = vmatpush.msra.mxu0 0.0
    %781 = vmatpush.msra.mxu0 0.0
    %782 = vmatpush.msra.mxu0 0.0
    %783 = vmatpush.msra.mxu0 0.0
    %784 = vmatpush.msra.mxu0 0.0
    %785 = vmatpush.msra.mxu0 %v765
    %786 = vmatpush.msra.mxu0 %v764
    %787 = vmatpush.msra.mxu0 %v763
    %788 = vmatpush.msra.mxu0 %v762
    %789 = vmatmul.f32.gmra.mxu0 %v768
    %v790 = vpop.f32.mrf.mxu0
    %v791 = vadd.f32 %v766, %v790
    %792 = vmatmul.f32.gmra.mxu0 %v771
    %v793 = vpop.f32.mrf.mxu0
    %v794 = vadd.f32 %v766, %v793
    %795 = vdwg.mxu0
    %v796 = vmax.f32 %v791, 0.0
    %v797 = vmax.f32 %v794, 0.0
    %v798 = vld [vmem:[%s2] sm:$0xff]
    %v799 = vld [vmem:[%s2 + $0x8] sm:$0xff]
    %v800 = vld [vmem:[%s2 + $0x10] sm:$0xff]
    %v801 = vld [vmem:[%s2 + $0x18] sm:$0xff]
    %v802 = vld [vmem:[%s2 + $0x20] sm:$0xff]
    %v803 = vld [vmem:[%s2 + $0x28] sm:$0xff]
    %v804 = vld [vmem:[%s2 + $0x30] sm:$0xff]
    %v805 = vld [vmem:[%s2 + $0x38] sm:$0xff]
    %v806 = vld [vmem:[%s2 + $0x40] sm:$0xff]
    %v807 = vld [vmem:[%s2 + $0x48] sm:$0xff]
    %v808 = vld [vmem:[%s2 + $0x50] sm:$0xff]
    %v809 = vld [vmem:[%s2 + $0x58] sm:$0xff]
    %v810 = vld [vmem:[%s2 + $0x60] sm:$0xff]
    %v811 = vld [vmem:[%s2 + $0x68] sm:$0xff]
    %v812 = vld [vmem:[%s2 + $0x70] sm:$0xff]
    %v813 = vld [vmem:[%s2 + $0x78] sm:$0xff]
    %v814 = vperm.slane %v20, 5
    %815 = vmatpush.msra.mxu0 %v813
    %816 = vmatpush.msra.mxu0 %v812
    %817 = vmatpush.msra.mxu0 %v811
    %818 = vmatpush.msra.mxu0 %v810
    %819 = vmatpush.msra.mxu0 %v809
    %820 = vmatpush.msra.mxu0 %v808
    %821 = vmatpush.msra.mxu0 %v807
    %822 = vmatpush.msra.mxu0 %v806
    %823 = vmatpush.msra.mxu0 %v805
    %824 = vmatpush.msra.mxu0 %v804
    %825 = vmatpush.msra.mxu0 %v803
    %826 = vmatpush.msra.mxu0 %v802
    %827 = vmatpush.msra.mxu0 %v801
    %828 = vmatpush.msra.mxu0 %v800
    %829 = vmatpush.msra.mxu0 %v799
    %830 = vmatpush.msra.mxu0 %v798
    %831 = vmatmul.f32.gmra.mxu0 %v796
    %v832 = vpop.f32.mrf.mxu0
    %v833 = vadd.f32 %v814, %v832
    %834 = vmatmul.f32.gmra.mxu0 %v797
    %v835 = vpop.f32.mrf.mxu0
    %v836 = vadd.f32 %v814, %v835
    %837 = vdwg.mxu0
    %v838 = vadd.f32 %v760, %v833
    %v839 = vadd.f32 %v761, %v836
    %840 = vst.msk [vmem:[#allocation3] sm:$0xff] %vm21, %v838
    %841 = vst.msk [vmem:[#allocation3 + $0x8] sm:$0xff] %vm21, %v839
    // Predicated region
    $region18: #{transformer_block.1} parent=1 // pred_check
      _
    $region19: #{transformer_block.1} parent=1 // pred_check_branch
      %843 = sbr.rel (0) target = $region21
    $region20: #{transformer_block.1} parent=1 // pred_region
      %845 = vsyncadd [#allocation4], 0
      %s846 = sshll.u32 [#allocation3], 4
      %s847 = int_to_ptr.vmem [resolvable:$true] %s846
      %s848 = sshll.u32 %s4, 4
      %s849 = int_to_ptr.hbm [resolvable:$true] %s848
      %854 = dma.vmem_to_hbm [thread:$0]  %s847, 256, %s849, [#allocation4], 128, 128, 8
    $region21: #{transformer_block.1} parent=1 // pred_fallthru
      _
    // Predicated region
    $region22: #{transformer_block.1} parent=1 // pred_check
      _
    $region23: #{transformer_block.1} parent=1 // pred_check_branch
      %856 = sbr.rel (0) target = $region25
    $region24: #{transformer_block.1} parent=1 // pred_region
      %858 = dma.done [#allocation4], 256
    $region25: #{transformer_block.1} parent=1 // pred_fallthru
      _
    %859 = vsyncpa [#allocation4], 1

</llo_original>
